<compile_context>
chip_gen: v6e
topology: v6e:2x2x1
jax: 0.10.0
libtpu: 0.0.40
codegen_flags: <defaults>
</compile_context>

<pallas_src>
import functools

import jax
import jax.numpy as jnp
from jax import lax
from jax.experimental import pallas as pl
from jax.experimental.pallas import tpu as pltpu

BN_EPS = 1e-5


def _tdf_layer_kernel(h_ref, wt_ref, gamma_ref, beta_ref, o_ref,
                      sum_ref, sumsq_ref, scale_ref, shift_ref,
                      *, count, bn_eps):
    """Fused Linear(no bias) -> BatchNorm1d(train) -> ReLU, two-pass grid."""
    p = pl.program_id(0)
    first_tile = (pl.program_id(1) == 0) & (pl.program_id(2) == 0)

    # (O, tile_t) = (O, D) @ (D, tile_t); MXU with f32 accumulation.
    y = jnp.dot(wt_ref[...], h_ref[...].astype(wt_ref.dtype),
                preferred_element_type=jnp.float32)

    @pl.when((p == 0) & first_tile)
    def _init_stats():
        sum_ref[...] = jnp.zeros_like(sum_ref)
        sumsq_ref[...] = jnp.zeros_like(sumsq_ref)

    @pl.when(p == 0)
    def _accumulate_stats():
        sum_ref[...] += jnp.sum(y, axis=1, keepdims=True)
        sumsq_ref[...] += jnp.sum(y * y, axis=1, keepdims=True)

    @pl.when((p == 1) & first_tile)
    def _fold_bn():
        inv_n = 1.0 / count
        mean = sum_ref[...] * inv_n
        # Guard E[y^2] - E[y]^2 against tiny negative values from cancellation.
        var = jnp.maximum(sumsq_ref[...] * inv_n - mean * mean, 0.0)
        scale = gamma_ref[...] * lax.rsqrt(var + bn_eps)
        scale_ref[...] = scale
        shift_ref[...] = beta_ref[...] - mean * scale

    @pl.when(p == 1)
    def _normalize():
        o_ref[...] = jnp.maximum(
            y * scale_ref[...] + shift_ref[...], 0.0).astype(o_ref.dtype)


def _pick_tile_t(T):
    """Largest 128-multiple tile dividing T, else the full (always legal) T."""
    if T % 128 == 0:
        for cand in (512, 384, 256, 128):
            if T % cand == 0:
                return cand
    return T


def _tdf_layer(h, wt, gamma, beta, *, count, out_dtype, tile_t):
    """One fused layer: h (M, D, T) -> (M, O, T)."""
    M, D, T = h.shape
    O = wt.shape[0]
    assert T % tile_t == 0
    n_t = T // tile_t
    grid = (2, M, n_t)  # (pass, batch*channel element, time tile)

    kernel = functools.partial(_tdf_layer_kernel, count=float(count),
                               bn_eps=BN_EPS)

    return pl.pallas_call(
        kernel,
        out_shape=jax.ShapeDtypeStruct((M, O, T), out_dtype),
        grid_spec=pltpu.PrefetchScalarGridSpec(
            num_scalar_prefetch=0,
            grid=grid,
            in_specs=[
                pl.BlockSpec((None, D, tile_t), lambda p, m, tt: (m, 0, tt)),
                pl.BlockSpec((O, D), lambda p, m, tt: (0, 0)),   # resident W^T
                pl.BlockSpec((O, 1), lambda p, m, tt: (0, 0)),   # gamma
                pl.BlockSpec((O, 1), lambda p, m, tt: (0, 0)),   # beta
            ],
            # Constant block index during pass 0 so no uninitialized tile is
            # ever flushed to HBM before pass 1 writes the real values.
            out_specs=pl.BlockSpec((None, O, tile_t),
                                   lambda p, m, tt: (m * p, 0, tt * p)),
            scratch_shapes=[
                pltpu.VMEM((O, 1), jnp.float32),   # per-feature sum
                pltpu.VMEM((O, 1), jnp.float32),   # per-feature sum of squares
                pltpu.VMEM((O, 1), jnp.float32),   # folded BN scale
                pltpu.VMEM((O, 1), jnp.float32),   # folded BN shift
            ],
        ),
        compiler_params=pltpu.CompilerParams(
            # Resident stat accumulators + pass ordering need a sequential grid.
            dimension_semantics=("arbitrary", "arbitrary", "arbitrary"),
            vmem_limit_bytes=48 * 1024 * 1024,     # also fits v7x's 64 MiB VMEM
        ),
    )(h, wt, gamma, beta)


def init_tdf_params(key, in_features, num_layers=1, bottleneck_factor=1,
                    min_units=16):
    """Deterministic params with the exact layer shapes of TDFBlock.__init__.

    Each layer: (weight (in, out) [== torch Linear.weight.T],
                 gamma (out,), beta (out,))."""
    dims = []
    current = in_features
    for _ in range(num_layers - 1):
        hidden = max(in_features // bottleneck_factor, min_units)
        dims.append((current, hidden))
        current = hidden
    dims.append((current, in_features))

    params = []
    for din, dout in dims:
        key, k1, k2, k3 = jax.random.split(key, 4)
        w = jax.random.normal(k1, (din, dout), jnp.float32) / jnp.sqrt(float(din))
        gamma = 1.0 + 0.1 * jax.random.normal(k2, (dout,), jnp.float32)
        beta = 0.1 * jax.random.normal(k3, (dout,), jnp.float32)
        params.append((w, gamma, beta))
    return params


def tdf_block_forward(x, params, *, compute_dtype=jnp.bfloat16):
    """x: (B, C, F, T) float32 -> (B, C, F, T), matching TDFBlock.forward."""
    B, C, F, T = x.shape
    # Native-layout contraction over F: no transposes, only reshapes.
    h = x.reshape(B * C, F, T)
    count = B * C * T                   # BatchNorm1d sample count
    tile_t = _pick_tile_t(T)
    n_layers = len(params)
    for li, (w, gamma, beta) in enumerate(params):
        wt = w.T.astype(compute_dtype)                  # (O, D) MXU lhs
        g = gamma.reshape(-1, 1).astype(jnp.float32)
        b = beta.reshape(-1, 1).astype(jnp.float32)
        # Inter-layer activations stay in compute_dtype (bf16 by default) to
        # halve inter-layer HBM traffic; the final layer emits float32.
        out_dtype = jnp.float32 if li == n_layers - 1 else compute_dtype
        h = _tdf_layer(h, wt, g, b, count=count, out_dtype=out_dtype,
                       tile_t=tile_t)
    return h.reshape(B, C, F, T)


def tdf_block_ref(x, params, *, compute_dtype=jnp.bfloat16):
    """Pure-JAX reference (training-mode BatchNorm), mirroring the kernel's
    matmul / inter-layer precision so the comparison isolates kernel bugs."""
    B, C, F, T = x.shape
    h = jnp.transpose(x, (0, 3, 1, 2)).reshape(-1, F)   # torch row layout
    n_layers = len(params)
    for li, (w, gamma, beta) in enumerate(params):
        y = jnp.dot(h.astype(compute_dtype), w.astype(compute_dtype),
                    preferred_element_type=jnp.float32)
        mean = jnp.mean(y, axis=0, keepdims=True)
        var = jnp.mean(jnp.square(y - mean), axis=0, keepdims=True)
        y = (y - mean) * lax.rsqrt(var + BN_EPS) * gamma[None, :] + beta[None, :]
        h = jnp.maximum(y, 0.0)
        if li < n_layers - 1:
            h = h.astype(compute_dtype).astype(jnp.float32)
    out = h.reshape(B, T, C, F)
    return jnp.transpose(out, (0, 2, 3, 1))


if __name__ == "__main__":
    # Small shapes consistent with the module: B=2, C=4, F=32, T=8.
    B, C, F, T = 2, 4, 32, 8
    num_layers, bottleneck_factor, min_units = 2, 2, 16   # hidden = max(16,16)=16

    key = jax.random.PRNGKey(0)
    kx, kp = jax.random.split(key)
    x = jax.random.normal(kx, (B, C, F, T), jnp.float32)
    params = init_tdf_params(kp, F, num_layers, bottleneck_factor, min_units)

    # 1) Strict correctness check: f32 matmul path, tight tolerance.
    out_f32 = jax.block_until_ready(
        tdf_block_forward(x, params, compute_dtype=jnp.float32))
    ref_f32 = jax.block_until_ready(
        tdf_block_ref(x, params, compute_dtype=jnp.float32))
    assert out_f32.shape == (B, C, F, T) and out_f32.dtype == jnp.float32
    assert jnp.allclose(out_f32, ref_f32, rtol=1e-3, atol=1e-3), (
        "Pallas kernel (f32 path) does not match reference")

    # 2) Performance path: bf16 MXU inputs / bf16 inter-layer activations.
    #    Reference mirrors the same casts; looser tolerance only covers
    #    summation-order and one-ulp bf16 rounding-boundary differences.
    out_bf16 = jax.block_until_ready(tdf_block_forward(x, params))
    ref_bf16 = jax.block_until_ready(tdf_block_ref(x, params))
    assert out_bf16.shape == (B, C, F, T) and out_bf16.dtype == jnp.float32
    assert jnp.allclose(out_bf16, ref_bf16, rtol=2e-2, atol=2e-2), (
        "Pallas kernel (bf16 path) does not match reference")

    print("KERNEL_OK")
</pallas_src>

<mosaic_0001>
module attributes {stable_mosaic.version = 11 : i64} {
  func.func @_tdf_layer_kernel(%arg0: i32, %arg1: i32, %arg2: i32, %arg3: memref<1x32x8xf32, #tpu.memory_space<vmem>>, %arg4: memref<16x32xf32, #tpu.memory_space<vmem>>, %arg5: memref<16x1xf32, #tpu.memory_space<vmem>>, %arg6: memref<16x1xf32, #tpu.memory_space<vmem>>, %arg7: memref<1x16x8xf32, #tpu.memory_space<vmem>>, %arg8: memref<16x1xf32, #tpu.memory_space<vmem>>, %arg9: memref<16x1xf32, #tpu.memory_space<vmem>>, %arg10: memref<16x1xf32, #tpu.memory_space<vmem>>, %arg11: memref<16x1xf32, #tpu.memory_space<vmem>>) attributes {dimension_semantics = [#tpu.dimension_semantics<arbitrary>, #tpu.dimension_semantics<arbitrary>, #tpu.dimension_semantics<arbitrary>], iteration_bounds = array<i64: 2, 8, 1>, scalar_prefetch = 0 : i64, scratch_operands = 4 : i64, tpu.core_type = #tpu.core_type<tc>, window_params = [{transform_indices = @transform_0, window_bounds = array<i64: 1, 32, 8>}, {pipeline_mode = #tpu.pipeline_mode<synchronous>, transform_indices = @transform_1, window_bounds = array<i64: 16, 32>}, {pipeline_mode = #tpu.pipeline_mode<synchronous>, transform_indices = @transform_2, window_bounds = array<i64: 16, 1>}, {pipeline_mode = #tpu.pipeline_mode<synchronous>, transform_indices = @transform_3, window_bounds = array<i64: 16, 1>}, {transform_indices = @transform_4, window_bounds = array<i64: 1, 16, 8>}]} {
    %c0_i32 = arith.constant 0 : i32
    %0 = arith.cmpi eq, %arg1, %c0_i32 : i32
    %c0_i32_0 = arith.constant 0 : i32
    %1 = arith.cmpi eq, %arg2, %c0_i32_0 : i32
    %2 = arith.andi %0, %1 : i1
    %c0 = arith.constant 0 : index
    %c0_1 = arith.constant 0 : index
    %3 = vector.load %arg4[%c0, %c0_1] : memref<16x32xf32, #tpu.memory_space<vmem>>, vector<16x32xf32>
    %c0_2 = arith.constant 0 : index
    %c0_3 = arith.constant 0 : index
    %c0_4 = arith.constant 0 : index
    %4 = vector.load %arg3[%c0_2, %c0_3, %c0_4] : memref<1x32x8xf32, #tpu.memory_space<vmem>>, vector<1x32x8xf32>
    %5 = vector.shape_cast %4 : vector<1x32x8xf32> to vector<32x8xf32>
    %cst = arith.constant dense<0.000000e+00> : vector<16x8xf32>
    %6 = tpu.matmul %3, %5, %cst {dimension_numbers = #tpu.dot_dimension_numbers<[1], [0], [0], [1], [0, 0, 1, 1], [], []>} : vector<16x32xf32>, vector<32x8xf32>, vector<16x8xf32> -> vector<16x8xf32>
    %c0_i32_5 = arith.constant 0 : i32
    %7 = arith.cmpi eq, %arg0, %c0_i32_5 : i32
    %8 = arith.andi %7, %2 : i1
    %9 = arith.extui %8 : i1 to i32
    %c0_i32_6 = arith.constant 0 : i32
    %10 = arith.cmpi ne, %9, %c0_i32_6 : i32
    scf.if %10 {
      %cst_12 = arith.constant 0.000000e+00 : f32
      %21 = vector.broadcast %cst_12 : f32 to vector<16x1xf32>
      %c0_13 = arith.constant 0 : index
      %c0_14 = arith.constant 0 : index
      %22 = vector.load %arg8[%c0_13, %c0_14] : memref<16x1xf32, #tpu.memory_space<vmem>>, vector<16x1xf32>
      tpu.vector_store %arg8[%c0_13, %c0_14], %21 {strides = array<i32>} : memref<16x1xf32, #tpu.memory_space<vmem>>, vector<16x1xf32>,
      %cst_15 = arith.constant 0.000000e+00 : f32
      %23 = vector.broadcast %cst_15 : f32 to vector<16x1xf32>
      %c0_16 = arith.constant 0 : index
      %c0_17 = arith.constant 0 : index
      %24 = vector.load %arg9[%c0_16, %c0_17] : memref<16x1xf32, #tpu.memory_space<vmem>>, vector<16x1xf32>
      tpu.vector_store %arg9[%c0_16, %c0_17], %23 {strides = array<i32>} : memref<16x1xf32, #tpu.memory_space<vmem>>, vector<16x1xf32>,
    } else {
    }
    %c0_i32_7 = arith.constant 0 : i32
    %11 = arith.cmpi eq, %arg0, %c0_i32_7 : i32
    %12 = arith.extui %11 : i1 to i32
    %c0_i32_8 = arith.constant 0 : i32
    %13 = arith.cmpi ne, %12, %c0_i32_8 : i32
    scf.if %13 {
      %c0_12 = arith.constant 0 : index
      %c0_13 = arith.constant 0 : index
      %21 = vector.load %arg8[%c0_12, %c0_13] : memref<16x1xf32, #tpu.memory_space<vmem>>, vector<16x1xf32>
      %cst_14 = arith.constant dense<0.000000e+00> : vector<16xf32>
      %22 = vector.multi_reduction <add>, %6, %cst_14 [1] : vector<16x8xf32> to vector<16xf32>
      %23 = vector.shape_cast %22 : vector<16xf32> to vector<16x1xf32>
      %24 = arith.addf %21, %23 : vector<16x1xf32>
      %c0_15 = arith.constant 0 : index
      %c0_16 = arith.constant 0 : index
      %25 = vector.load %arg8[%c0_15, %c0_16] : memref<16x1xf32, #tpu.memory_space<vmem>>, vector<16x1xf32>
      tpu.vector_store %arg8[%c0_15, %c0_16], %24 {strides = array<i32>} : memref<16x1xf32, #tpu.memory_space<vmem>>, vector<16x1xf32>,
      %c0_17 = arith.constant 0 : index
      %c0_18 = arith.constant 0 : index
      %26 = vector.load %arg9[%c0_17, %c0_18] : memref<16x1xf32, #tpu.memory_space<vmem>>, vector<16x1xf32>
      %27 = arith.mulf %6, %6 : vector<16x8xf32>
      %cst_19 = arith.constant dense<0.000000e+00> : vector<16xf32>
      %28 = vector.multi_reduction <add>, %27, %cst_19 [1] : vector<16x8xf32> to vector<16xf32>
      %29 = vector.shape_cast %28 : vector<16xf32> to vector<16x1xf32>
      %30 = arith.addf %26, %29 : vector<16x1xf32>
      %c0_20 = arith.constant 0 : index
      %c0_21 = arith.constant 0 : index
      %31 = vector.load %arg9[%c0_20, %c0_21] : memref<16x1xf32, #tpu.memory_space<vmem>>, vector<16x1xf32>
      tpu.vector_store %arg9[%c0_20, %c0_21], %30 {strides = array<i32>} : memref<16x1xf32, #tpu.memory_space<vmem>>, vector<16x1xf32>,
    } else {
    }
    %c1_i32 = arith.constant 1 : i32
    %14 = arith.cmpi eq, %arg0, %c1_i32 : i32
    %15 = arith.andi %14, %2 : i1
    %16 = arith.extui %15 : i1 to i32
    %c0_i32_9 = arith.constant 0 : i32
    %17 = arith.cmpi ne, %16, %c0_i32_9 : i32
    scf.if %17 {
      %c0_12 = arith.constant 0 : index
      %c0_13 = arith.constant 0 : index
      %21 = vector.load %arg8[%c0_12, %c0_13] : memref<16x1xf32, #tpu.memory_space<vmem>>, vector<16x1xf32>
      %cst_14 = arith.constant 1.562500e-02 : f32
      %22 = vector.broadcast %cst_14 : f32 to vector<16x1xf32>
      %23 = arith.mulf %21, %22 : vector<16x1xf32>
      %c0_15 = arith.constant 0 : index
      %c0_16 = arith.constant 0 : index
      %24 = vector.load %arg9[%c0_15, %c0_16] : memref<16x1xf32, #tpu.memory_space<vmem>>, vector<16x1xf32>
      %cst_17 = arith.constant 1.562500e-02 : f32
      %25 = vector.broadcast %cst_17 : f32 to vector<16x1xf32>
      %26 = arith.mulf %24, %25 : vector<16x1xf32>
      %27 = arith.mulf %23, %23 : vector<16x1xf32>
      %28 = arith.subf %26, %27 : vector<16x1xf32>
      %cst_18 = arith.constant 0.000000e+00 : f32
      %29 = vector.broadcast %cst_18 : f32 to vector<16x1xf32>
      %30 = arith.maximumf %28, %29 : vector<16x1xf32>
      %c0_19 = arith.constant 0 : index
      %c0_20 = arith.constant 0 : index
      %31 = vector.load %arg5[%c0_19, %c0_20] : memref<16x1xf32, #tpu.memory_space<vmem>>, vector<16x1xf32>
      %cst_21 = arith.constant 9.99999974E-6 : f32
      %32 = vector.broadcast %cst_21 : f32 to vector<16x1xf32>
      %33 = arith.addf %30, %32 : vector<16x1xf32>
      %34 = math.rsqrt %33 : vector<16x1xf32>
      %35 = arith.mulf %31, %34 : vector<16x1xf32>
      %c0_22 = arith.constant 0 : index
      %c0_23 = arith.constant 0 : index
      %36 = vector.load %arg10[%c0_22, %c0_23] : memref<16x1xf32, #tpu.memory_space<vmem>>, vector<16x1xf32>
      tpu.vector_store %arg10[%c0_22, %c0_23], %35 {strides = array<i32>} : memref<16x1xf32, #tpu.memory_space<vmem>>, vector<16x1xf32>,
      %c0_24 = arith.constant 0 : index
      %c0_25 = arith.constant 0 : index
      %37 = vector.load %arg6[%c0_24, %c0_25] : memref<16x1xf32, #tpu.memory_space<vmem>>, vector<16x1xf32>
      %38 = arith.mulf %23, %35 : vector<16x1xf32>
      %39 = arith.subf %37, %38 : vector<16x1xf32>
      %c0_26 = arith.constant 0 : index
      %c0_27 = arith.constant 0 : index
      %40 = vector.load %arg11[%c0_26, %c0_27] : memref<16x1xf32, #tpu.memory_space<vmem>>, vector<16x1xf32>
      tpu.vector_store %arg11[%c0_26, %c0_27], %39 {strides = array<i32>} : memref<16x1xf32, #tpu.memory_space<vmem>>, vector<16x1xf32>,
    } else {
    }
    %c1_i32_10 = arith.constant 1 : i32
    %18 = arith.cmpi eq, %arg0, %c1_i32_10 : i32
    %19 = arith.extui %18 : i1 to i32
    %c0_i32_11 = arith.constant 0 : i32
    %20 = arith.cmpi ne, %19, %c0_i32_11 : i32
    scf.if %20 {
      %c0_12 = arith.constant 0 : index
      %c0_13 = arith.constant 0 : index
      %21 = vector.load %arg10[%c0_12, %c0_13] : memref<16x1xf32, #tpu.memory_space<vmem>>, vector<16x1xf32>
      %22 = vector.broadcast %21 : vector<16x1xf32> to vector<16x8xf32>
      %23 = arith.mulf %6, %22 : vector<16x8xf32>
      %c0_14 = arith.constant 0 : index
      %c0_15 = arith.constant 0 : index
      %24 = vector.load %arg11[%c0_14, %c0_15] : memref<16x1xf32, #tpu.memory_space<vmem>>, vector<16x1xf32>
      %25 = vector.broadcast %24 : vector<16x1xf32> to vector<16x8xf32>
      %26 = arith.addf %23, %25 : vector<16x8xf32>
      %cst_16 = arith.constant 0.000000e+00 : f32
      %27 = vector.broadcast %cst_16 : f32 to vector<16x8xf32>
      %28 = arith.maximumf %26, %27 : vector<16x8xf32>
      %c0_17 = arith.constant 0 : index
      %c0_18 = arith.constant 0 : index
      %c0_19 = arith.constant 0 : index
      %29 = vector.load %arg7[%c0_17, %c0_18, %c0_19] : memref<1x16x8xf32, #tpu.memory_space<vmem>>, vector<1x16x8xf32>
      %30 = vector.shape_cast %29 : vector<1x16x8xf32> to vector<16x8xf32>
      %31 = vector.shape_cast %28 : vector<16x8xf32> to vector<1x16x8xf32>
      tpu.vector_store %arg7[%c0_17, %c0_18, %c0_19], %31 {strides = array<i32>} : memref<1x16x8xf32, #tpu.memory_space<vmem>>, vector<1x16x8xf32>,
    } else {
    }
    return
  }
  func.func @transform_0(%arg0: i32, %arg1: i32, %arg2: i32) -> (i32, i32, i32) {
    %c0_i32 = arith.constant 0 : i32
    %c0_i32_0 = arith.constant 0 : i32
    return %arg1, %c0_i32, %arg2 : i32, i32, i32
  }
  func.func @transform_1(%arg0: i32, %arg1: i32, %arg2: i32) -> (i32, i32) {
    %c0_i32 = arith.constant 0 : i32
    %c0_i32_0 = arith.constant 0 : i32
    %c0_i32_1 = arith.constant 0 : i32
    return %c0_i32, %c0_i32_0 : i32, i32
  }
  func.func @transform_2(%arg0: i32, %arg1: i32, %arg2: i32) -> (i32, i32) {
    %c0_i32 = arith.constant 0 : i32
    %c0_i32_0 = arith.constant 0 : i32
    %c0_i32_1 = arith.constant 0 : i32
    return %c0_i32, %c0_i32_0 : i32, i32
  }
  func.func @transform_3(%arg0: i32, %arg1: i32, %arg2: i32) -> (i32, i32) {
    %c0_i32 = arith.constant 0 : i32
    %c0_i32_0 = arith.constant 0 : i32
    %c0_i32_1 = arith.constant 0 : i32
    return %c0_i32, %c0_i32_0 : i32, i32
  }
  func.func @transform_4(%arg0: i32, %arg1: i32, %arg2: i32) -> (i32, i32, i32) {
    %0 = arith.muli %arg1, %arg0 : i32
    %1 = arith.muli %arg2, %arg0 : i32
    %c0_i32 = arith.constant 0 : i32
    %c0_i32_0 = arith.constant 0 : i32
    return %0, %c0_i32, %1 : i32, i32, i32
  }
}

</mosaic_0001>

<llo_original>
// kernel: tpu_custom_call.1
$region0: #{tpu_custom_call.1}
  #allocation0 [shape = 'u32[]', space=smem, size = 0x4, offset = 0x4, fixed_abs, tag = 'smem constant byte address 0x4 - core index']
  #allocation1 [shape = 'u32[144,128]{1,0:T(1,128)}', space=vmem, size = 0x12000, scoped, tag = 'internal scratch']
  #allocation2 [shape = 'f32[16,1]{1,0:T(8,128)}', space=vmem, size = 0x2000, scoped, tag = 'scratch operand']
  #allocation3 [shape = 'f32[16,1]{1,0:T(8,128)}', space=vmem, size = 0x2000, scoped, tag = 'scratch operand']
  #allocation4 [shape = 'f32[16,1]{1,0:T(8,128)}', space=vmem, size = 0x2000, scoped, tag = 'scratch operand']
  #allocation5 [shape = 'f32[16,1]{1,0:T(8,128)}', space=vmem, size = 0x2000, scoped, tag = 'scratch operand']
  %s0 = inlined_call_operand.vmem [shape: f32[8,32,8], index: 0, kind: input, shape index: {}]
  %s1 = inlined_call_operand.vmem [shape: f32[16,32], index: 1, kind: input, shape index: {}]
  %s2 = inlined_call_operand.vmem [shape: f32[16,1], index: 2, kind: input, shape index: {}]
  %s3 = inlined_call_operand.vmem [shape: f32[16,1], index: 3, kind: input, shape index: {}]
  %s4 = inlined_call_operand.vmem [shape: f32[8,16,8], index: 4, kind: output, shape index: {}]
  %s5 = sld [smem:[#allocation0]]
  $region65: #{tpu_custom_call.1} parent=0
    _
  %s7 = ssub.s32 1, %s5
  %s8 = scalar_select 0, %s7, %s5
  loop: start=0, step=1, limit=18
  $region2: #{tpu_custom_call.1} parent=0 // loop_pre_header
    _
  $region3: #{tpu_custom_call.1} parent=0 // loop_header
    %s10 = sphi 0, %s14
    %p11 = scmp.ge.s32.totalorder %s10, 18
    %s17 = sphi 0, %s36
    %s18 = sphi 0, %s32
    %s19 = sphi 0, %s28
    %s20 = sphi 0, %s17
    %s21 = sphi 0, %s18
    %s22 = sphi 0, %s19
    %s23 = sphi 0, %s20
    %s24 = sphi 0, %s21
    %s25 = sphi 0, %s22
    %s41 = sphi 0, %s43
    %s44 = sphi 0, %s41
    %s45 = sphi 0, %s44
    %s61 = sphi 0, %s45
    %s65 = sphi 0, %s65
    %s67 = sphi 0, %s65
    %s68 = sphi 0, %s67
    %s82 = sphi 0, %s68
    %s86 = sphi 0, %s86
    %s88 = sphi 0, %s86
    %s89 = sphi 0, %s88
    %s103 = sphi 0, %s89
    %s107 = sphi 0, %s107
    %s109 = sphi 0, %s107
    %s110 = sphi 0, %s109
    %s124 = sphi 0, %s110
    %s136 = sphi 0, %s138
    %s139 = sphi 0, %s136
    %s140 = sphi 0, %s139
    %s156 = sphi 0, %s140
  $region4: #{tpu_custom_call.1} parent=0 // loop_header_branch
    %13 = sbr.rel (%p11) target = $region8
  $region5: #{tpu_custom_call.1} parent=0 // loop_body
    %s15 = ssub.s32 %s10, 1
    %s16 = ssub.s32 %s10, 2
    %s26 = sadd.s32 1, %s19
    %p27 = scmp.ge.s32.totalorder %s26, 1
    %s28 = scalar_select %p27, 0, %s26
    %s29 = sadd.s32 1, %s18
    %s30 = scalar_select %p27, %s29, %s18
    %p31 = scmp.ge.s32.totalorder %s30, 8
    %s32 = scalar_select %p31, 0, %s30
    %s33 = sadd.s32 1, %s17
    %s34 = scalar_select %p31, %s33, %s17
    %p35 = scmp.ge.s32.totalorder %s34, 2
    %s36 = scalar_select %p35, 0, %s34
    %s37 = ssub.s32 %s18, %s32
    %s38 = ssub.s32 %s19, %s28
    %s39 = sor.u32 %s37, %s38
    %p40 = scmp.eq.s32.totalorder %s39, 0
    %s42 = sadd.s32 %s41, 1
    %s43 = scalar_select %p40, %s41, %s42
    %p46 = pneg %p40
    %p47 = scmp.eq.s32.totalorder %s10, 15
    %p48 = por %p46, %p47
    %p49 = scmp.ne.s32.totalorder %s41, %s44
    %p50 = scmp.eq.s32.totalorder %s10, 0
    %p51 = por %p49, %p50
    %p52 = scmp.ne.s32.totalorder %s41, %s44
    %p53 = scmp.eq.s32.totalorder %s15, 15
    %p54 = por %p52, %p53
    %p55 = scmp.ne.s32.totalorder %s44, %s45
    %p56 = scmp.eq.s32.totalorder %s15, 0
    %p57 = por %p55, %p56
    %p58 = scmp.ne.s32.totalorder %s44, %s45
    %p59 = scmp.eq.s32.totalorder %s16, 15
    %p60 = por %p58, %p59
    %p62 = scmp.ne.s32.totalorder %s45, %s61
    %p63 = scmp.eq.s32.totalorder %s16, 0
    %p64 = por %p62, %p63
    %s66 = sadd.s32 %s65, 1
    %p69 = scmp.eq.s32.totalorder %s10, 15
    %p70 = scmp.ne.s32.totalorder %s65, %s67
    %p71 = scmp.eq.s32.totalorder %s10, 0
    %p72 = por %p70, %p71
    %p73 = scmp.ne.s32.totalorder %s65, %s67
    %p74 = scmp.eq.s32.totalorder %s15, 15
    %p75 = por %p73, %p74
    %p76 = scmp.ne.s32.totalorder %s67, %s68
    %p77 = scmp.eq.s32.totalorder %s15, 0
    %p78 = por %p76, %p77
    %p79 = scmp.ne.s32.totalorder %s67, %s68
    %p80 = scmp.eq.s32.totalorder %s16, 15
    %p81 = por %p79, %p80
    %p83 = scmp.ne.s32.totalorder %s68, %s82
    %p84 = scmp.eq.s32.totalorder %s16, 0
    %p85 = por %p83, %p84
    %s87 = sadd.s32 %s86, 1
    %p90 = scmp.eq.s32.totalorder %s10, 15
    %p91 = scmp.ne.s32.totalorder %s86, %s88
    %p92 = scmp.eq.s32.totalorder %s10, 0
    %p93 = por %p91, %p92
    %p94 = scmp.ne.s32.totalorder %s86, %s88
    %p95 = scmp.eq.s32.totalorder %s15, 15
    %p96 = por %p94, %p95
    %p97 = scmp.ne.s32.totalorder %s88, %s89
    %p98 = scmp.eq.s32.totalorder %s15, 0
    %p99 = por %p97, %p98
    %p100 = scmp.ne.s32.totalorder %s88, %s89
    %p101 = scmp.eq.s32.totalorder %s16, 15
    %p102 = por %p100, %p101
    %p104 = scmp.ne.s32.totalorder %s89, %s103
    %p105 = scmp.eq.s32.totalorder %s16, 0
    %p106 = por %p104, %p105
    %s108 = sadd.s32 %s107, 1
    %p111 = scmp.eq.s32.totalorder %s10, 15
    %p112 = scmp.ne.s32.totalorder %s107, %s109
    %p113 = scmp.eq.s32.totalorder %s10, 0
    %p114 = por %p112, %p113
    %p115 = scmp.ne.s32.totalorder %s107, %s109
    %p116 = scmp.eq.s32.totalorder %s15, 15
    %p117 = por %p115, %p116
    %p118 = scmp.ne.s32.totalorder %s109, %s110
    %p119 = scmp.eq.s32.totalorder %s15, 0
    %p120 = por %p118, %p119
    %p121 = scmp.ne.s32.totalorder %s109, %s110
    %p122 = scmp.eq.s32.totalorder %s16, 15
    %p123 = por %p121, %p122
    %p125 = scmp.ne.s32.totalorder %s110, %s124
    %p126 = scmp.eq.s32.totalorder %s16, 0
    %p127 = por %p125, %p126
    %s128 = smul.u32 %s18, %s17
    %s129 = smul.u32 %s19, %s17
    %s130 = smul.u32 %s32, %s36
    %s131 = smul.u32 %s28, %s36
    %s132 = ssub.s32 %s128, %s130
    %s133 = ssub.s32 %s129, %s131
    %s134 = sor.u32 %s132, %s133
    %p135 = scmp.eq.s32.totalorder %s134, 0
    %s137 = sadd.s32 %s136, 1
    %s138 = scalar_select %p135, %s136, %s137
    %p141 = pneg %p135
    %p142 = scmp.eq.s32.totalorder %s10, 15
    %p143 = por %p141, %p142
    %p144 = scmp.ne.s32.totalorder %s136, %s139
    %p145 = scmp.eq.s32.totalorder %s10, 0
    %p146 = por %p144, %p145
    %p147 = scmp.ne.s32.totalorder %s136, %s139
    %p148 = scmp.eq.s32.totalorder %s15, 15
    %p149 = por %p147, %p148
    %p150 = scmp.ne.s32.totalorder %s139, %s140
    %p151 = scmp.eq.s32.totalorder %s15, 0
    %p152 = por %p150, %p151
    %p153 = scmp.ne.s32.totalorder %s139, %s140
    %p154 = scmp.eq.s32.totalorder %s16, 15
    %p155 = por %p153, %p154
    %p157 = scmp.ne.s32.totalorder %s140, %s156
    %p158 = scmp.eq.s32.totalorder %s16, 0
    %p159 = por %p157, %p158
    %p160 = scmp.le.s32.totalorder 1, %s10
    %p161 = scmp.lt.s32.totalorder %s10, 17
    %p162 = pnand %p160, %p161
    %p163 = pneg %p162
    // Predicated region
    $region9: #{tpu_custom_call.1} parent=5 // pred_check
      _
    $region10: #{tpu_custom_call.1} parent=5 // pred_check_branch
      %165 = sbr.rel (%p162) target = $region12
    $region11: #{tpu_custom_call.1} parent=5 // pred_region
      %s166 = ssub.s32 %s10, 1
      // Predicated region
      $region13: #{tpu_custom_call.1} parent=11 // pred_check
        %p167 = pneg %p78
      $region14: #{tpu_custom_call.1} parent=11 // pred_check_branch
        %169 = sbr.rel (%p167) target = $region16
      $region15: #{tpu_custom_call.1} parent=11 // pred_region
        _
      $region16: #{tpu_custom_call.1} parent=11 // pred_fallthru
        _
      // Predicated region
      $region17: #{tpu_custom_call.1} parent=11 // pred_check
        %p170 = pneg %p99
      $region18: #{tpu_custom_call.1} parent=11 // pred_check_branch
        %172 = sbr.rel (%p170) target = $region20
      $region19: #{tpu_custom_call.1} parent=11 // pred_region
        _
      $region20: #{tpu_custom_call.1} parent=11 // pred_fallthru
        _
      // Predicated region
      $region21: #{tpu_custom_call.1} parent=11 // pred_check
        %p173 = pneg %p120
      $region22: #{tpu_custom_call.1} parent=11 // pred_check_branch
        %175 = sbr.rel (%p173) target = $region24
      $region23: #{tpu_custom_call.1} parent=11 // pred_region
        _
      $region24: #{tpu_custom_call.1} parent=11 // pred_fallthru
        _
    $region12: #{tpu_custom_call.1} parent=5 // pred_fallthru
      _
    %p176 = scmp.lt.s32.totalorder %s10, 16
    // Predicated region
    $region25: #{tpu_custom_call.1} parent=5 // pred_check
      %p177 = pneg %p176
    $region26: #{tpu_custom_call.1} parent=5 // pred_check_branch
      %179 = sbr.rel (%p177) target = $region28
    $region27: #{tpu_custom_call.1} parent=5 // pred_region
      // Predicated region
      $region29: #{tpu_custom_call.1} parent=27 // pred_check
        %p180 = pneg %p51
      $region30: #{tpu_custom_call.1} parent=27 // pred_check_branch
        %182 = sbr.rel (%p180) target = $region32
      $region31: #{tpu_custom_call.1} parent=27 // pred_region
        %p183 = scmp.lt.s32.totalorder %s18, 7
        %s184 = scalar_select %p183, %s18, 7
        %p185 = scmp.lt.s32.totalorder %s19, 0
        %s186 = scalar_select %p185, %s19, 0
        %s187 = smul.addr %s184, 4
        %s188 = sadd.s32 %s186, %s187
        %s189 = smul.addr %s188, 8
        %s190 = scalar_lea.vmem %s0, %s189
      $region32: #{tpu_custom_call.1} parent=27 // pred_fallthru
        _
    $region28: #{tpu_custom_call.1} parent=5 // pred_fallthru
      _
    %p191 = scmp.le.s32.totalorder 1, %s10
    %p192 = scmp.lt.s32.totalorder %s10, 17
    %p193 = pnand %p191, %p192
    %p194 = pneg %p193
    // Predicated region
    $region33: #{tpu_custom_call.1} parent=5 // pred_check
      _
    $region34: #{tpu_custom_call.1} parent=5 // pred_check_branch
      %196 = sbr.rel (%p193) target = $region36
    $region35: #{tpu_custom_call.1} parent=5 // pred_region
      %s197 = ssub.s32 %s10, 1
      %p198 = scmp.lt.s32.totalorder %s21, 7
      %s199 = scalar_select %p198, %s21, 7
      %p200 = scmp.lt.s32.totalorder %s22, 0
      %s201 = scalar_select %p200, %s22, 0
      %s202 = smul.addr %s199, 4
      %s203 = sadd.s32 %s201, %s202
      %s204 = smul.addr %s203, 8
      %s205 = scalar_lea.vmem %s0, %s204
      %p206 = pneg %p57
      %p207 = pneg %p54
      %p208 = pneg %p78
      %p209 = pneg %p75
      %p210 = pneg %p99
      %p211 = pneg %p96
      %p212 = pneg %p120
      %p213 = pneg %p117
      %p214 = pneg %p152
      %p215 = pneg %p149
      %s216 = smul.u32 %s21, %s20
      %s217 = smul.u32 %s22, %s20
      %p218 = scmp.lt.s32.totalorder %s216, 7
      %s219 = scalar_select %p218, %s216, 7
      %p220 = scmp.lt.s32.totalorder %s217, 0
      %s221 = scalar_select %p220, %s217, 0
      %s222 = smul.addr %s219, 2
      %s223 = sadd.s32 %s221, %s222
      %s224 = smul.addr %s223, 8
      %s225 = scalar_lea.vmem %s4, %s224
      %p226 = scmp.lt.s32.totalorder %s21, 7
      %s227 = scalar_select %p226, %s21, 7
      %p228 = scmp.lt.s32.totalorder %s22, 0
      %s229 = scalar_select %p228, %s22, 0
      %s230 = smul.addr %s227, 4
      %s231 = sadd.s32 %s229, %s230
      %s232 = smul.addr %s231, 8
      %s233 = scalar_lea.vmem %s0, %s232
      %s234 = smul.u32 %s21, %s20
      %s235 = smul.u32 %s22, %s20
      %p236 = scmp.lt.s32.totalorder %s234, 7
      %s237 = scalar_select %p236, %s234, 7
      %p238 = scmp.lt.s32.totalorder %s235, 0
      %s239 = scalar_select %p238, %s235, 0
      %s240 = smul.addr %s237, 2
      %s241 = sadd.s32 %s239, %s240
      %s242 = smul.addr %s241, 8
      %s243 = scalar_lea.vmem %s4, %s242
      %s244 = smul.u32 %s21, %s20
      %s245 = smul.u32 %s22, %s20
      %p246 = scmp.eq.s32.totalorder %s21, 0
      %p247 = scmp.eq.s32.totalorder %s22, 0
      %p248 = pnand %p246, %p247
      %p249 = pneg %p248
      %v250 = vld [vmem:[%s1] sm:$0xff]
      %v251 = vld [vmem:[%s1 + $0x8] sm:$0xff]
      %v252 = vld [vmem:[%s233] sm:$0xff]
      %v253 = vld [vmem:[%s233 + $0x8] sm:$0xff]
      %v254 = vld [vmem:[%s233 + $0x10] sm:$0xff]
      %v255 = vld [vmem:[%s233 + $0x18] sm:$0xff]
      %vm256 = vcmask 261120
      %v258 = vsel %vm256, %v250, 0
      %v261 = vsel %vm256, %v251, 0
      %263 = vmatprep.subr.mxu0 0.0
      %264 = vmatpush1.msra.mxu0 0.0
      %265 = vmatprep.subr.mxu0 0.0
      %266 = vmatpush1.msra.mxu0 0.0
      %267 = vmatprep.subr.mxu0 0.0
      %268 = vmatpush1.msra.mxu0 0.0
      %269 = vmatprep.subr.mxu0 0.0
      %270 = vmatpush1.msra.mxu0 0.0
      %271 = vmatprep.subr.mxu0 0.0
      %272 = vmatpush1.msra.mxu0 0.0
      %273 = vmatprep.subr.mxu0 0.0
      %274 = vmatpush1.msra.mxu0 0.0
      %275 = vmatprep.subr.mxu0 0.0
      %276 = vmatpush1.msra.mxu0 0.0
      %277 = vmatprep.subr.mxu0 0.0
      %278 = vmatpush1.msra.mxu0 0.0
      %279 = vmatprep.subr.mxu0 0.0
      %280 = vmatpush1.msra.mxu0 0.0
      %281 = vmatprep.subr.mxu0 0.0
      %282 = vmatpush1.msra.mxu0 0.0
      %283 = vmatprep.subr.mxu0 0.0
      %284 = vmatpush1.msra.mxu0 0.0
      %285 = vmatprep.subr.mxu0 0.0
      %286 = vmatpush1.msra.mxu0 0.0
      %287 = vmatprep.subr.mxu0 0.0
      %288 = vmatpush1.msra.mxu0 %v255
      %289 = vmatprep.subr.mxu0 0.0
      %290 = vmatpush1.msra.mxu0 %v254
      %291 = vmatprep.subr.mxu0 0.0
      %292 = vmatpush1.msra.mxu0 %v253
      %293 = vmatprep.subr.mxu0 0.0
      %294 = vmatpush1.msra.mxu0 %v252
      %295 = vmatprep.subr.mxu0 0.0
      %296 = vmatpush2.msra.mxu0 0.0
      %297 = vmatprep.subr.mxu0 0.0
      %298 = vmatpush2.msra.mxu0 0.0
      %299 = vmatprep.subr.mxu0 0.0
      %300 = vmatpush2.msra.mxu0 0.0
      %301 = vmatprep.subr.mxu0 0.0
      %302 = vmatpush2.msra.mxu0 0.0
      %303 = vmatprep.subr.mxu0 0.0
      %304 = vmatpush2.msra.mxu0 0.0
      %305 = vmatprep.subr.mxu0 0.0
      %306 = vmatpush2.msra.mxu0 0.0
      %307 = vmatprep.subr.mxu0 0.0
      %308 = vmatpush2.msra.mxu0 0.0
      %309 = vmatprep.subr.mxu0 0.0
      %310 = vmatpush2.msra.mxu0 0.0
      %311 = vmatprep.subr.mxu0 0.0
      %312 = vmatpush2.msra.mxu0 0.0
      %313 = vmatprep.subr.mxu0 0.0
      %314 = vmatpush2.msra.mxu0 0.0
      %315 = vmatprep.subr.mxu0 0.0
      %316 = vmatpush2.msra.mxu0 0.0
      %317 = vmatprep.subr.mxu0 0.0
      %318 = vmatpush2.msra.mxu0 0.0
      %319 = vmatprep.subr.mxu0 0.0
      %320 = vmatpush2.msra.mxu0 0.0
      %321 = vmatprep.subr.mxu0 0.0
      %322 = vmatpush2.msra.mxu0 0.0
      %323 = vmatprep.subr.mxu0 0.0
      %324 = vmatpush2.msra.mxu0 0.0
      %325 = vmatprep.subr.mxu0 0.0
      %326 = vmatpush2.msra.mxu0 0.0
      %327 = vmatprep.mubr.f32.mxu0 0.0
      %328 = vmatmul.mubr.f32.gmra.mxu0 %v258
      %v329 = vpop.f32.mrf.mxu0
      %v330 = vadd.f32 0.0, %v329
      %v331 = vpop.f32.mrf.mxu0
      %332 = vmatprep.mubr.f32.mxu0 0.0
      %333 = vmatmul.mubr.f32.gmra.mxu0 %v261
      %v334 = vpop.f32.mrf.mxu0
      %v335 = vadd.f32 0.0, %v334
      %v336 = vpop.f32.mrf.mxu0
      %337 = vdwg.mxu0
      %p338 = scmp.eq.s32.totalorder %s20, 0
      %p339 = pnand %p338, %p249
      %p340 = pneg %p339
      // Predicated region
      $region37: #{tpu_custom_call.1} parent=35 // pred_check
        _
      $region38: #{tpu_custom_call.1} parent=35 // pred_check_branch
        %342 = sbr.rel (%p339) target = $region40
      $region39: #{tpu_custom_call.1} parent=35 // pred_region
        %vm343 = vcmask 7168
        %344 = vst.msk [vmem:[#allocation2] sm:$0xff] %vm343, 0.0
        %345 = vst.msk [vmem:[#allocation2 + $0x8] sm:$0xff] %vm343, 0.0
        %346 = vst.msk [vmem:[#allocation3] sm:$0xff] %vm343, 0.0
        %347 = vst.msk [vmem:[#allocation3 + $0x8] sm:$0xff] %vm343, 0.0
      $region40: #{tpu_custom_call.1} parent=35 // pred_fallthru
        _
      // Predicated region
      $region41: #{tpu_custom_call.1} parent=35 // pred_check
        %p348 = pneg %p338
      $region42: #{tpu_custom_call.1} parent=35 // pred_check_branch
        %350 = sbr.rel (%p348) target = $region44
      $region43: #{tpu_custom_call.1} parent=35 // pred_region
        %v351 = vld [vmem:[#allocation2] sm:$0xff]
        %v352 = vld [vmem:[#allocation2 + $0x8] sm:$0xff]
        %vm353 = vcmask 64512
        %v354 = vsel %vm353, %v330, 0.0
        %355 = vadd.xlane.f32.xlu0 %v354
        %v356 = vpop.xlane.xlu0 %355
        %v357 = vsel %vm353, %v335, 0.0
        %358 = vadd.xlane.f32.xlu0 %v357
        %v359 = vpop.xlane.xlu0 %358
        %v360 = vadd.f32 %v351, %v356
        %v361 = vadd.f32 %v352, %v359
        %vm362 = vcmask 7168
        %363 = vst.msk [vmem:[#allocation2] sm:$0xff] %vm362, %v360
        %364 = vst.msk [vmem:[#allocation2 + $0x8] sm:$0xff] %vm362, %v361
        %v365 = vld [vmem:[#allocation3] sm:$0xff]
        %v366 = vld [vmem:[#allocation3 + $0x8] sm:$0xff]
        %v367 = vmul.f32 %v330, %v330
        %v368 = vmul.f32 %v335, %v335
        %v369 = vsel %vm353, %v367, 0.0
        %370 = vadd.xlane.f32.xlu0 %v369
        %v371 = vpop.xlane.xlu0 %370
        %v372 = vsel %vm353, %v368, 0.0
        %373 = vadd.xlane.f32.xlu0 %v372
        %v374 = vpop.xlane.xlu0 %373
        %v375 = vadd.f32 %v365, %v371
        %v376 = vadd.f32 %v366, %v374
        %377 = vst.msk [vmem:[#allocation3] sm:$0xff] %vm362, %v375
        %378 = vst.msk [vmem:[#allocation3 + $0x8] sm:$0xff] %vm362, %v376
      $region44: #{tpu_custom_call.1} parent=35 // pred_fallthru
        _
      %p379 = scmp.eq.s32.totalorder %s20, 1
      %p380 = pnand %p379, %p249
      %p381 = pneg %p380
      // Predicated region
      $region45: #{tpu_custom_call.1} parent=35 // pred_check
        _
      $region46: #{tpu_custom_call.1} parent=35 // pred_check_branch
        %383 = sbr.rel (%p380) target = $region48
      $region47: #{tpu_custom_call.1} parent=35 // pred_region
        %v384 = vld [vmem:[#allocation2] sm:$0xff]
        %v385 = vld [vmem:[#allocation2 + $0x8] sm:$0xff]
        %v386 = vmul.f32 %v384, 0.015625
        %v387 = vmul.f32 %v385, 0.015625
        %v388 = vld [vmem:[#allocation3] sm:$0xff]
        %v389 = vld [vmem:[#allocation3 + $0x8] sm:$0xff]
        %v390 = vmul.f32 %v388, 0.015625
        %v391 = vmul.f32 %v389, 0.015625
        %v392 = vmul.f32 %v386, %v386
        %v393 = vmul.f32 %v387, %v387
        %v394 = vsub.f32 %v390, %v392
        %v395 = vsub.f32 %v391, %v393
        %v396 = vmax.f32 %v394, 0.0
        %v397 = vmax.f32 %v395, 0.0
        %v398 = vld [vmem:[%s2] sm:$0xff]
        %v399 = vld [vmem:[%s2 + $0x8] sm:$0xff]
        %v400 = vadd.f32 %v396, 1e-05
        %v401 = vadd.f32 %v397, 1e-05
        %v402 = vrsqrt.pop %v400
        %v403 = vrsqrt.pop %v401
        %v404 = vmul.f32 %v398, %v402
        %v405 = vmul.f32 %v399, %v403
        %vm406 = vcmask 7168
        %407 = vst.msk [vmem:[#allocation4] sm:$0xff] %vm406, %v404
        %408 = vst.msk [vmem:[#allocation4 + $0x8] sm:$0xff] %vm406, %v405
        %v409 = vld [vmem:[%s3] sm:$0xff]
        %v410 = vld [vmem:[%s3 + $0x8] sm:$0xff]
        %v411 = vmul.f32 %v386, %v404
        %v412 = vmul.f32 %v387, %v405
        %v413 = vsub.f32 %v409, %v411
        %v414 = vsub.f32 %v410, %v412
        %415 = vst.msk [vmem:[#allocation5] sm:$0xff] %vm406, %v413
        %416 = vst.msk [vmem:[#allocation5 + $0x8] sm:$0xff] %vm406, %v414
      $region48: #{tpu_custom_call.1} parent=35 // pred_fallthru
        _
      // Predicated region
      $region49: #{tpu_custom_call.1} parent=35 // pred_check
        %p417 = pneg %p379
      $region50: #{tpu_custom_call.1} parent=35 // pred_check_branch
        %419 = sbr.rel (%p417) target = $region52
      $region51: #{tpu_custom_call.1} parent=35 // pred_region
        %v420 = vld [vmem:[#allocation4] sm:$0xff]
        %v421 = vld [vmem:[#allocation4 + $0x8] sm:$0xff]
        %423 = vset.pattern.permute.xlu0 0
        %424 = vperm.xlu0 %423, %v420
        %v425 = vpop.permute.xlu0 %424
        %428 = vset.pattern.permute.xlu0 0
        %429 = vperm.xlu0 %428, %v421
        %v430 = vpop.permute.xlu0 %429
        %v432 = vmul.f32 %v330, %v425
        %v433 = vmul.f32 %v335, %v430
        %v434 = vld [vmem:[#allocation5] sm:$0xff]
        %v435 = vld [vmem:[#allocation5 + $0x8] sm:$0xff]
        %437 = vset.pattern.permute.xlu0 0
        %438 = vperm.xlu0 %437, %v434
        %v439 = vpop.permute.xlu0 %438
        %442 = vset.pattern.permute.xlu0 0
        %443 = vperm.xlu0 %442, %v435
        %v444 = vpop.permute.xlu0 %443
        %v446 = vadd.f32 %v432, %v439
        %v447 = vadd.f32 %v433, %v444
        %v448 = vmax.f32 %v446, 0.0
        %v449 = vmax.f32 %v447, 0.0
        %vm450 = vcmask 64512
        %451 = vst.msk [vmem:[%s243] sm:$0xff] %vm450, %v448
        %452 = vst.msk [vmem:[%s243 + $0x8] sm:$0xff] %vm450, %v449
      $region52: #{tpu_custom_call.1} parent=35 // pred_fallthru
        _
      %s453 = smul.u32 %s21, %s20
      %s454 = smul.u32 %s22, %s20
      %p455 = scmp.lt.s32.totalorder %s453, 7
      %s456 = scalar_select %p455, %s453, 7
      %p457 = scmp.lt.s32.totalorder %s454, 0
      %s458 = scalar_select %p457, %s454, 0
      %s459 = smul.addr %s456, 2
      %s460 = sadd.s32 %s458, %s459
      %s461 = smul.addr %s460, 8
      %s462 = scalar_lea.vmem %s4, %s461
      // Predicated region
      $region53: #{tpu_custom_call.1} parent=35 // pred_check
        %p463 = pneg %p149
      $region54: #{tpu_custom_call.1} parent=35 // pred_check_branch
        %465 = sbr.rel (%p463) target = $region56
      $region55: #{tpu_custom_call.1} parent=35 // pred_region
        %s466 = smul.u32 %s21, %s20
        %s467 = smul.u32 %s22, %s20
      $region56: #{tpu_custom_call.1} parent=35 // pred_fallthru
        _
    $region36: #{tpu_custom_call.1} parent=5 // pred_fallthru
      _
    %p468 = scmp.le.s32.totalorder 2, %s10
    // Predicated region
    $region57: #{tpu_custom_call.1} parent=5 // pred_check
      %p469 = pneg %p468
    $region58: #{tpu_custom_call.1} parent=5 // pred_check_branch
      %471 = sbr.rel (%p469) target = $region60
    $region59: #{tpu_custom_call.1} parent=5 // pred_region
      %s472 = ssub.s32 %s10, 2
      // Predicated region
      $region61: #{tpu_custom_call.1} parent=59 // pred_check
        %p473 = pneg %p155
      $region62: #{tpu_custom_call.1} parent=59 // pred_check_branch
        %475 = sbr.rel (%p473) target = $region64
      $region63: #{tpu_custom_call.1} parent=59 // pred_region
        %s476 = smul.u32 %s24, %s23
        %s477 = smul.u32 %s25, %s23
        %p478 = scmp.lt.s32.totalorder %s476, 7
        %s479 = scalar_select %p478, %s476, 7
        %p480 = scmp.lt.s32.totalorder %s477, 0
        %s481 = scalar_select %p480, %s477, 0
        %s482 = smul.addr %s479, 2
        %s483 = sadd.s32 %s481, %s482
        %s484 = smul.addr %s483, 8
        %s485 = scalar_lea.vmem %s4, %s484
      $region64: #{tpu_custom_call.1} parent=59 // pred_fallthru
        _
    $region60: #{tpu_custom_call.1} parent=5 // pred_fallthru
      _
  $region6: #{tpu_custom_call.1} parent=0 // loop_footer
    %s14 = sadd.s32 1, %s10
  $region7: #{tpu_custom_call.1} parent=0 // loop_footer_branch
    %9 = sbr.rel target = $region3
  $region8: #{tpu_custom_call.1} parent=0 // loop_exit
    _

</llo_original>
